<compile_context>
chip_gen: v5e
topology: v5e:2x2
jax: 0.10.0
libtpu: 0.0.40
codegen_flags: <defaults>
</compile_context>

<pallas_src>
import jax
import jax.numpy as jnp
from jax.experimental import pallas as pl
from jax.experimental.pallas import tpu as pltpu

# Constant folds (divides -> multiplies; XLA keeps them as compile-time consts).
_INV_1_055 = 1.0 / 1.055
_INV_12_92 = 1.0 / 12.92
_INV_X_SC = 1.0 / 0.95047
_INV_Z_SC = 1.0 / 1.08883
_THIRD = 1.0 / 3.0


def _rgb2lab_tile(r, g, b):
    """r, g, b: (S, 128) float32 RGB tiles -> (l_rs, a_rs, b_rs), each (S, 128)."""

    def srgb_lin(c):
        c = jnp.abs(c)
        return jnp.where(
            c > 0.04045,
            ((c + 0.055) * _INV_1_055) ** 2.4,
            c * _INV_12_92,
        )

    r = srgb_lin(r)
    g = srgb_lin(g)
    b = srgb_lin(b)

    # 3x3 color mix stays on the VPU (a 3-wide contraction would waste the MXU).
    x = 0.412453 * r + 0.35758 * g + 0.180423 * b
    y = 0.212671 * r + 0.71516 * g + 0.072169 * b
    z = 0.019334 * r + 0.119193 * g + 0.950227 * b

    x = x * _INV_X_SC
    # y scale is 1.0
    z = z * _INV_Z_SC

    def f(c):
        return jnp.where(c > 0.008856, c ** _THIRD, 7.787 * c + 16.0 / 116.0)

    fx = f(x)
    fy = f(y)
    fz = f(z)

    L = 116.0 * fy - 16.0
    a = 500.0 * (fx - fy)
    bb = 200.0 * (fy - fz)

    # rgb2lab normalization: l_cent=50, l_norm=100, ab_norm=110
    l_rs = (L - 50.0) * (1.0 / 100.0)
    a_rs = a * (1.0 / 110.0)
    b_rs = bb * (1.0 / 110.0)
    return l_rs, a_rs, b_rs


def _lab_l1_kernel(out_ref, tgt_ref, partial_ref, acc_ref):
    # Grid: (n, t).  out_ref / tgt_ref blocks: (1, 3, S, 128).
    t = pl.program_id(1)

    @pl.when(t == 0)
    def _init():
        acc_ref[...] = jnp.zeros_like(acc_ref)

    ol, oa, ob = _rgb2lab_tile(out_ref[0, 0], out_ref[0, 1], out_ref[0, 2])
    tl, ta, tb = _rgb2lab_tile(tgt_ref[0, 0], tgt_ref[0, 1], tgt_ref[0, 2])

    diff = jnp.abs(ol - tl) + jnp.abs(oa - ta) + jnp.abs(ob - tb)  # (S, 128)
    acc_ref[...] += diff  # pure VPU, no per-step cross-lane reduce

    @pl.when(t == pl.num_programs(1) - 1)
    def _finalize():
        # Single sublane reduce + lane-dense store per image.
        partial_ref[...] = jnp.sum(acc_ref[...], axis=0, keepdims=True)[None]


def _choose_block_rows(rows, max_rows):
    """Pick S (sublane rows per block): multiple of 8 dividing `rows`, or full axis."""
    if rows <= max_rows:
        return rows
    candidates = [s for s in range(8, max_rows + 1, 8) if rows % s == 0]
    if candidates:
        return max(candidates)
    return rows  # fall back to whole spatial axis in one block (always legal)


def lab_loss(output, target, *, max_block_rows=512):
    """output, target: (N, 3, H, W) RGB.  Returns scalar L1 loss in Lab space."""
    N, C, H, W = output.shape
    assert C == 3
    HW = H * W
    assert HW % 128 == 0, "H*W must be a multiple of 128"
    rows = HW // 128
    S = _choose_block_rows(rows, max_block_rows)

    out_flat = output.astype(jnp.float32).reshape(N, 3, rows, 128)
    tgt_flat = target.astype(jnp.float32).reshape(N, 3, rows, 128)

    grid = (N, rows // S)

    partials = pl.pallas_call(
        _lab_l1_kernel,
        out_shape=jax.ShapeDtypeStruct((N, 1, 128), jnp.float32),
        grid_spec=pltpu.PrefetchScalarGridSpec(
            num_scalar_prefetch=0,
            grid=grid,
            in_specs=[
                pl.BlockSpec((1, 3, S, 128), lambda n, t: (n, 0, t, 0)),
                pl.BlockSpec((1, 3, S, 128), lambda n, t: (n, 0, t, 0)),
            ],
            out_specs=pl.BlockSpec((1, 1, 128), lambda n, t: (n, 0, 0)),
            scratch_shapes=[pltpu.VMEM((S, 128), jnp.float32)],
        ),
        compiler_params=pltpu.CompilerParams(
            # N axis is independent -> megacore-shardable on v7x;
            # spatial axis carries the accumulator -> arbitrary.
            dimension_semantics=("parallel", "arbitrary"),
        ),
    )(out_flat, tgt_flat)

    # L1Loss mean over all N*3*H*W elements of the Lab tensors.
    return jnp.sum(partials) / jnp.float32(N * 3 * HW)


if __name__ == "__main__":
    key = jax.random.PRNGKey(0)
    k1, k2 = jax.random.split(key)
    N, C, H, W = 2, 3, 16, 16
    output = jax.random.uniform(k1, (N, C, H, W), dtype=jnp.float32)
    target = jax.random.uniform(k2, (N, C, H, W), dtype=jnp.float32)

    loss = lab_loss(output, target)
    jax.block_until_ready(loss)

    # Pure-JAX reference of the PyTorch math (divisions kept as in the spec).
    def rgb2lab_ref(rgb):
        c = jnp.abs(rgb)
        lin = jnp.where(c > 0.04045, ((c + 0.055) / 1.055) ** 2.4, c / 12.92)
        r, g, b = lin[:, 0], lin[:, 1], lin[:, 2]
        x = 0.412453 * r + 0.35758 * g + 0.180423 * b
        y = 0.212671 * r + 0.71516 * g + 0.072169 * b
        z = 0.019334 * r + 0.119193 * g + 0.950227 * b
        xyz = jnp.stack([x / 0.95047, y, z / 1.08883], axis=1)
        f = jnp.where(xyz > 0.008856, xyz ** (1.0 / 3.0), 7.787 * xyz + 16.0 / 116.0)
        L = 116.0 * f[:, 1] - 16.0
        a = 500.0 * (f[:, 0] - f[:, 1])
        bb = 200.0 * (f[:, 1] - f[:, 2])
        return jnp.stack([(L - 50.0) / 100.0, a / 110.0, bb / 110.0], axis=1)

    ref = jnp.mean(jnp.abs(rgb2lab_ref(output) - rgb2lab_ref(target)))
    assert jnp.allclose(loss, ref, rtol=1e-5, atol=1e-5), (loss, ref)
    print("KERNEL_OK")
</pallas_src>

<mosaic_0001>
module attributes {stable_mosaic.version = 11 : i64} {
  func.func @_lab_l1_kernel(%arg0: i32, %arg1: i32, %arg2: memref<1x3x2x128xf32, #tpu.memory_space<vmem>>, %arg3: memref<1x3x2x128xf32, #tpu.memory_space<vmem>>, %arg4: memref<1x1x128xf32, #tpu.memory_space<vmem>>, %arg5: memref<2x128xf32, #tpu.memory_space<vmem>>) attributes {dimension_semantics = [#tpu.dimension_semantics<parallel>, #tpu.dimension_semantics<arbitrary>], iteration_bounds = array<i64: 2, 1>, scalar_prefetch = 0 : i64, scratch_operands = 1 : i64, tpu.core_type = #tpu.core_type<tc>, window_params = [{transform_indices = @transform_0, window_bounds = array<i64: 1, 3, 2, 128>}, {transform_indices = @transform_1, window_bounds = array<i64: 1, 3, 2, 128>}, {transform_indices = @transform_2, window_bounds = array<i64: 1, 1, 128>}]} {
    %c0_i32 = arith.constant 0 : i32
    %0 = arith.cmpi eq, %arg1, %c0_i32 : i32
    %1 = arith.extui %0 : i1 to i32
    %c0_i32_0 = arith.constant 0 : i32
    %2 = arith.cmpi ne, %1, %c0_i32_0 : i32
    scf.if %2 {
      %cst_119 = arith.constant 0.000000e+00 : f32
      %247 = vector.broadcast %cst_119 : f32 to vector<2x128xf32>
      %c0_120 = arith.constant 0 : index
      %c0_121 = arith.constant 0 : index
      %248 = vector.load %arg5[%c0_120, %c0_121] : memref<2x128xf32, #tpu.memory_space<vmem>>, vector<2x128xf32>
      tpu.vector_store %arg5[%c0_120, %c0_121], %247 {strides = array<i32>} : memref<2x128xf32, #tpu.memory_space<vmem>>, vector<2x128xf32>,
    } else {
    }
    %c0 = arith.constant 0 : index
    %c0_1 = arith.constant 0 : index
    %c0_2 = arith.constant 0 : index
    %c0_3 = arith.constant 0 : index
    %3 = vector.load %arg2[%c0, %c0_1, %c0_2, %c0_3] : memref<1x3x2x128xf32, #tpu.memory_space<vmem>>, vector<1x1x2x128xf32>
    %4 = vector.shape_cast %3 : vector<1x1x2x128xf32> to vector<2x128xf32>
    %c0_4 = arith.constant 0 : index
    %c1 = arith.constant 1 : index
    %c0_5 = arith.constant 0 : index
    %c0_6 = arith.constant 0 : index
    %5 = vector.load %arg2[%c0_4, %c1, %c0_5, %c0_6] : memref<1x3x2x128xf32, #tpu.memory_space<vmem>>, vector<1x1x2x128xf32>
    %6 = vector.shape_cast %5 : vector<1x1x2x128xf32> to vector<2x128xf32>
    %c0_7 = arith.constant 0 : index
    %c2 = arith.constant 2 : index
    %c0_8 = arith.constant 0 : index
    %c0_9 = arith.constant 0 : index
    %7 = vector.load %arg2[%c0_7, %c2, %c0_8, %c0_9] : memref<1x3x2x128xf32, #tpu.memory_space<vmem>>, vector<1x1x2x128xf32>
    %8 = vector.shape_cast %7 : vector<1x1x2x128xf32> to vector<2x128xf32>
    %9 = math.absf %4 : vector<2x128xf32>
    %cst = arith.constant 4.045000e-02 : f32
    %10 = vector.broadcast %cst : f32 to vector<2x128xf32>
    %11 = arith.cmpf ogt, %9, %10 : vector<2x128xf32>
    %cst_10 = arith.constant 5.500000e-02 : f32
    %12 = vector.broadcast %cst_10 : f32 to vector<2x128xf32>
    %13 = arith.addf %9, %12 : vector<2x128xf32>
    %cst_11 = arith.constant 0.947867274 : f32
    %14 = vector.broadcast %cst_11 : f32 to vector<2x128xf32>
    %15 = arith.mulf %13, %14 : vector<2x128xf32>
    %cst_12 = arith.constant 2.400000e+00 : f32
    %16 = vector.broadcast %cst_12 : f32 to vector<2x128xf32>
    %17 = math.powf %15, %16 : vector<2x128xf32>
    %cst_13 = arith.constant 0.0773993805 : f32
    %18 = vector.broadcast %cst_13 : f32 to vector<2x128xf32>
    %19 = arith.mulf %9, %18 : vector<2x128xf32>
    %20 = arith.select %11, %17, %19 : vector<2x128xi1>, vector<2x128xf32>
    %21 = math.absf %6 : vector<2x128xf32>
    %cst_14 = arith.constant 4.045000e-02 : f32
    %22 = vector.broadcast %cst_14 : f32 to vector<2x128xf32>
    %23 = arith.cmpf ogt, %21, %22 : vector<2x128xf32>
    %cst_15 = arith.constant 5.500000e-02 : f32
    %24 = vector.broadcast %cst_15 : f32 to vector<2x128xf32>
    %25 = arith.addf %21, %24 : vector<2x128xf32>
    %cst_16 = arith.constant 0.947867274 : f32
    %26 = vector.broadcast %cst_16 : f32 to vector<2x128xf32>
    %27 = arith.mulf %25, %26 : vector<2x128xf32>
    %cst_17 = arith.constant 2.400000e+00 : f32
    %28 = vector.broadcast %cst_17 : f32 to vector<2x128xf32>
    %29 = math.powf %27, %28 : vector<2x128xf32>
    %cst_18 = arith.constant 0.0773993805 : f32
    %30 = vector.broadcast %cst_18 : f32 to vector<2x128xf32>
    %31 = arith.mulf %21, %30 : vector<2x128xf32>
    %32 = arith.select %23, %29, %31 : vector<2x128xi1>, vector<2x128xf32>
    %33 = math.absf %8 : vector<2x128xf32>
    %cst_19 = arith.constant 4.045000e-02 : f32
    %34 = vector.broadcast %cst_19 : f32 to vector<2x128xf32>
    %35 = arith.cmpf ogt, %33, %34 : vector<2x128xf32>
    %cst_20 = arith.constant 5.500000e-02 : f32
    %36 = vector.broadcast %cst_20 : f32 to vector<2x128xf32>
    %37 = arith.addf %33, %36 : vector<2x128xf32>
    %cst_21 = arith.constant 0.947867274 : f32
    %38 = vector.broadcast %cst_21 : f32 to vector<2x128xf32>
    %39 = arith.mulf %37, %38 : vector<2x128xf32>
    %cst_22 = arith.constant 2.400000e+00 : f32
    %40 = vector.broadcast %cst_22 : f32 to vector<2x128xf32>
    %41 = math.powf %39, %40 : vector<2x128xf32>
    %cst_23 = arith.constant 0.0773993805 : f32
    %42 = vector.broadcast %cst_23 : f32 to vector<2x128xf32>
    %43 = arith.mulf %33, %42 : vector<2x128xf32>
    %44 = arith.select %35, %41, %43 : vector<2x128xi1>, vector<2x128xf32>
    %cst_24 = arith.constant 4.124530e-01 : f32
    %45 = vector.broadcast %cst_24 : f32 to vector<2x128xf32>
    %46 = arith.mulf %45, %20 : vector<2x128xf32>
    %cst_25 = arith.constant 3.575800e-01 : f32
    %47 = vector.broadcast %cst_25 : f32 to vector<2x128xf32>
    %48 = arith.mulf %47, %32 : vector<2x128xf32>
    %49 = arith.addf %46, %48 : vector<2x128xf32>
    %cst_26 = arith.constant 1.804230e-01 : f32
    %50 = vector.broadcast %cst_26 : f32 to vector<2x128xf32>
    %51 = arith.mulf %50, %44 : vector<2x128xf32>
    %52 = arith.addf %49, %51 : vector<2x128xf32>
    %cst_27 = arith.constant 2.126710e-01 : f32
    %53 = vector.broadcast %cst_27 : f32 to vector<2x128xf32>
    %54 = arith.mulf %53, %20 : vector<2x128xf32>
    %cst_28 = arith.constant 7.151600e-01 : f32
    %55 = vector.broadcast %cst_28 : f32 to vector<2x128xf32>
    %56 = arith.mulf %55, %32 : vector<2x128xf32>
    %57 = arith.addf %54, %56 : vector<2x128xf32>
    %cst_29 = arith.constant 7.216900e-02 : f32
    %58 = vector.broadcast %cst_29 : f32 to vector<2x128xf32>
    %59 = arith.mulf %58, %44 : vector<2x128xf32>
    %60 = arith.addf %57, %59 : vector<2x128xf32>
    %cst_30 = arith.constant 1.933400e-02 : f32
    %61 = vector.broadcast %cst_30 : f32 to vector<2x128xf32>
    %62 = arith.mulf %61, %20 : vector<2x128xf32>
    %cst_31 = arith.constant 1.191930e-01 : f32
    %63 = vector.broadcast %cst_31 : f32 to vector<2x128xf32>
    %64 = arith.mulf %63, %32 : vector<2x128xf32>
    %65 = arith.addf %62, %64 : vector<2x128xf32>
    %cst_32 = arith.constant 9.502270e-01 : f32
    %66 = vector.broadcast %cst_32 : f32 to vector<2x128xf32>
    %67 = arith.mulf %66, %44 : vector<2x128xf32>
    %68 = arith.addf %65, %67 : vector<2x128xf32>
    %cst_33 = arith.constant 1.05211103 : f32
    %69 = vector.broadcast %cst_33 : f32 to vector<2x128xf32>
    %70 = arith.mulf %52, %69 : vector<2x128xf32>
    %cst_34 = arith.constant 0.918417036 : f32
    %71 = vector.broadcast %cst_34 : f32 to vector<2x128xf32>
    %72 = arith.mulf %68, %71 : vector<2x128xf32>
    %cst_35 = arith.constant 8.856000e-03 : f32
    %73 = vector.broadcast %cst_35 : f32 to vector<2x128xf32>
    %74 = arith.cmpf ogt, %70, %73 : vector<2x128xf32>
    %cst_36 = arith.constant 0.333333343 : f32
    %75 = vector.broadcast %cst_36 : f32 to vector<2x128xf32>
    %76 = math.powf %70, %75 : vector<2x128xf32>
    %cst_37 = arith.constant 7.787000e+00 : f32
    %77 = vector.broadcast %cst_37 : f32 to vector<2x128xf32>
    %78 = arith.mulf %77, %70 : vector<2x128xf32>
    %cst_38 = arith.constant 0.137931034 : f32
    %79 = vector.broadcast %cst_38 : f32 to vector<2x128xf32>
    %80 = arith.addf %78, %79 : vector<2x128xf32>
    %81 = arith.select %74, %76, %80 : vector<2x128xi1>, vector<2x128xf32>
    %cst_39 = arith.constant 8.856000e-03 : f32
    %82 = vector.broadcast %cst_39 : f32 to vector<2x128xf32>
    %83 = arith.cmpf ogt, %60, %82 : vector<2x128xf32>
    %cst_40 = arith.constant 0.333333343 : f32
    %84 = vector.broadcast %cst_40 : f32 to vector<2x128xf32>
    %85 = math.powf %60, %84 : vector<2x128xf32>
    %cst_41 = arith.constant 7.787000e+00 : f32
    %86 = vector.broadcast %cst_41 : f32 to vector<2x128xf32>
    %87 = arith.mulf %86, %60 : vector<2x128xf32>
    %cst_42 = arith.constant 0.137931034 : f32
    %88 = vector.broadcast %cst_42 : f32 to vector<2x128xf32>
    %89 = arith.addf %87, %88 : vector<2x128xf32>
    %90 = arith.select %83, %85, %89 : vector<2x128xi1>, vector<2x128xf32>
    %cst_43 = arith.constant 8.856000e-03 : f32
    %91 = vector.broadcast %cst_43 : f32 to vector<2x128xf32>
    %92 = arith.cmpf ogt, %72, %91 : vector<2x128xf32>
    %cst_44 = arith.constant 0.333333343 : f32
    %93 = vector.broadcast %cst_44 : f32 to vector<2x128xf32>
    %94 = math.powf %72, %93 : vector<2x128xf32>
    %cst_45 = arith.constant 7.787000e+00 : f32
    %95 = vector.broadcast %cst_45 : f32 to vector<2x128xf32>
    %96 = arith.mulf %95, %72 : vector<2x128xf32>
    %cst_46 = arith.constant 0.137931034 : f32
    %97 = vector.broadcast %cst_46 : f32 to vector<2x128xf32>
    %98 = arith.addf %96, %97 : vector<2x128xf32>
    %99 = arith.select %92, %94, %98 : vector<2x128xi1>, vector<2x128xf32>
    %cst_47 = arith.constant 1.160000e+02 : f32
    %100 = vector.broadcast %cst_47 : f32 to vector<2x128xf32>
    %101 = arith.mulf %100, %90 : vector<2x128xf32>
    %cst_48 = arith.constant 1.600000e+01 : f32
    %102 = vector.broadcast %cst_48 : f32 to vector<2x128xf32>
    %103 = arith.subf %101, %102 : vector<2x128xf32>
    %104 = arith.subf %81, %90 : vector<2x128xf32>
    %cst_49 = arith.constant 5.000000e+02 : f32
    %105 = vector.broadcast %cst_49 : f32 to vector<2x128xf32>
    %106 = arith.mulf %105, %104 : vector<2x128xf32>
    %107 = arith.subf %90, %99 : vector<2x128xf32>
    %cst_50 = arith.constant 2.000000e+02 : f32
    %108 = vector.broadcast %cst_50 : f32 to vector<2x128xf32>
    %109 = arith.mulf %108, %107 : vector<2x128xf32>
    %cst_51 = arith.constant 5.000000e+01 : f32
    %110 = vector.broadcast %cst_51 : f32 to vector<2x128xf32>
    %111 = arith.subf %103, %110 : vector<2x128xf32>
    %cst_52 = arith.constant 0.00999999977 : f32
    %112 = vector.broadcast %cst_52 : f32 to vector<2x128xf32>
    %113 = arith.mulf %111, %112 : vector<2x128xf32>
    %cst_53 = arith.constant 0.0090909088 : f32
    %114 = vector.broadcast %cst_53 : f32 to vector<2x128xf32>
    %115 = arith.mulf %106, %114 : vector<2x128xf32>
    %cst_54 = arith.constant 0.0090909088 : f32
    %116 = vector.broadcast %cst_54 : f32 to vector<2x128xf32>
    %117 = arith.mulf %109, %116 : vector<2x128xf32>
    %c0_55 = arith.constant 0 : index
    %c0_56 = arith.constant 0 : index
    %c0_57 = arith.constant 0 : index
    %c0_58 = arith.constant 0 : index
    %118 = vector.load %arg3[%c0_55, %c0_56, %c0_57, %c0_58] : memref<1x3x2x128xf32, #tpu.memory_space<vmem>>, vector<1x1x2x128xf32>
    %119 = vector.shape_cast %118 : vector<1x1x2x128xf32> to vector<2x128xf32>
    %c0_59 = arith.constant 0 : index
    %c1_60 = arith.constant 1 : index
    %c0_61 = arith.constant 0 : index
    %c0_62 = arith.constant 0 : index
    %120 = vector.load %arg3[%c0_59, %c1_60, %c0_61, %c0_62] : memref<1x3x2x128xf32, #tpu.memory_space<vmem>>, vector<1x1x2x128xf32>
    %121 = vector.shape_cast %120 : vector<1x1x2x128xf32> to vector<2x128xf32>
    %c0_63 = arith.constant 0 : index
    %c2_64 = arith.constant 2 : index
    %c0_65 = arith.constant 0 : index
    %c0_66 = arith.constant 0 : index
    %122 = vector.load %arg3[%c0_63, %c2_64, %c0_65, %c0_66] : memref<1x3x2x128xf32, #tpu.memory_space<vmem>>, vector<1x1x2x128xf32>
    %123 = vector.shape_cast %122 : vector<1x1x2x128xf32> to vector<2x128xf32>
    %124 = math.absf %119 : vector<2x128xf32>
    %cst_67 = arith.constant 4.045000e-02 : f32
    %125 = vector.broadcast %cst_67 : f32 to vector<2x128xf32>
    %126 = arith.cmpf ogt, %124, %125 : vector<2x128xf32>
    %cst_68 = arith.constant 5.500000e-02 : f32
    %127 = vector.broadcast %cst_68 : f32 to vector<2x128xf32>
    %128 = arith.addf %124, %127 : vector<2x128xf32>
    %cst_69 = arith.constant 0.947867274 : f32
    %129 = vector.broadcast %cst_69 : f32 to vector<2x128xf32>
    %130 = arith.mulf %128, %129 : vector<2x128xf32>
    %cst_70 = arith.constant 2.400000e+00 : f32
    %131 = vector.broadcast %cst_70 : f32 to vector<2x128xf32>
    %132 = math.powf %130, %131 : vector<2x128xf32>
    %cst_71 = arith.constant 0.0773993805 : f32
    %133 = vector.broadcast %cst_71 : f32 to vector<2x128xf32>
    %134 = arith.mulf %124, %133 : vector<2x128xf32>
    %135 = arith.select %126, %132, %134 : vector<2x128xi1>, vector<2x128xf32>
    %136 = math.absf %121 : vector<2x128xf32>
    %cst_72 = arith.constant 4.045000e-02 : f32
    %137 = vector.broadcast %cst_72 : f32 to vector<2x128xf32>
    %138 = arith.cmpf ogt, %136, %137 : vector<2x128xf32>
    %cst_73 = arith.constant 5.500000e-02 : f32
    %139 = vector.broadcast %cst_73 : f32 to vector<2x128xf32>
    %140 = arith.addf %136, %139 : vector<2x128xf32>
    %cst_74 = arith.constant 0.947867274 : f32
    %141 = vector.broadcast %cst_74 : f32 to vector<2x128xf32>
    %142 = arith.mulf %140, %141 : vector<2x128xf32>
    %cst_75 = arith.constant 2.400000e+00 : f32
    %143 = vector.broadcast %cst_75 : f32 to vector<2x128xf32>
    %144 = math.powf %142, %143 : vector<2x128xf32>
    %cst_76 = arith.constant 0.0773993805 : f32
    %145 = vector.broadcast %cst_76 : f32 to vector<2x128xf32>
    %146 = arith.mulf %136, %145 : vector<2x128xf32>
    %147 = arith.select %138, %144, %146 : vector<2x128xi1>, vector<2x128xf32>
    %148 = math.absf %123 : vector<2x128xf32>
    %cst_77 = arith.constant 4.045000e-02 : f32
    %149 = vector.broadcast %cst_77 : f32 to vector<2x128xf32>
    %150 = arith.cmpf ogt, %148, %149 : vector<2x128xf32>
    %cst_78 = arith.constant 5.500000e-02 : f32
    %151 = vector.broadcast %cst_78 : f32 to vector<2x128xf32>
    %152 = arith.addf %148, %151 : vector<2x128xf32>
    %cst_79 = arith.constant 0.947867274 : f32
    %153 = vector.broadcast %cst_79 : f32 to vector<2x128xf32>
    %154 = arith.mulf %152, %153 : vector<2x128xf32>
    %cst_80 = arith.constant 2.400000e+00 : f32
    %155 = vector.broadcast %cst_80 : f32 to vector<2x128xf32>
    %156 = math.powf %154, %155 : vector<2x128xf32>
    %cst_81 = arith.constant 0.0773993805 : f32
    %157 = vector.broadcast %cst_81 : f32 to vector<2x128xf32>
    %158 = arith.mulf %148, %157 : vector<2x128xf32>
    %159 = arith.select %150, %156, %158 : vector<2x128xi1>, vector<2x128xf32>
    %cst_82 = arith.constant 4.124530e-01 : f32
    %160 = vector.broadcast %cst_82 : f32 to vector<2x128xf32>
    %161 = arith.mulf %160, %135 : vector<2x128xf32>
    %cst_83 = arith.constant 3.575800e-01 : f32
    %162 = vector.broadcast %cst_83 : f32 to vector<2x128xf32>
    %163 = arith.mulf %162, %147 : vector<2x128xf32>
    %164 = arith.addf %161, %163 : vector<2x128xf32>
    %cst_84 = arith.constant 1.804230e-01 : f32
    %165 = vector.broadcast %cst_84 : f32 to vector<2x128xf32>
    %166 = arith.mulf %165, %159 : vector<2x128xf32>
    %167 = arith.addf %164, %166 : vector<2x128xf32>
    %cst_85 = arith.constant 2.126710e-01 : f32
    %168 = vector.broadcast %cst_85 : f32 to vector<2x128xf32>
    %169 = arith.mulf %168, %135 : vector<2x128xf32>
    %cst_86 = arith.constant 7.151600e-01 : f32
    %170 = vector.broadcast %cst_86 : f32 to vector<2x128xf32>
    %171 = arith.mulf %170, %147 : vector<2x128xf32>
    %172 = arith.addf %169, %171 : vector<2x128xf32>
    %cst_87 = arith.constant 7.216900e-02 : f32
    %173 = vector.broadcast %cst_87 : f32 to vector<2x128xf32>
    %174 = arith.mulf %173, %159 : vector<2x128xf32>
    %175 = arith.addf %172, %174 : vector<2x128xf32>
    %cst_88 = arith.constant 1.933400e-02 : f32
    %176 = vector.broadcast %cst_88 : f32 to vector<2x128xf32>
    %177 = arith.mulf %176, %135 : vector<2x128xf32>
    %cst_89 = arith.constant 1.191930e-01 : f32
    %178 = vector.broadcast %cst_89 : f32 to vector<2x128xf32>
    %179 = arith.mulf %178, %147 : vector<2x128xf32>
    %180 = arith.addf %177, %179 : vector<2x128xf32>
    %cst_90 = arith.constant 9.502270e-01 : f32
    %181 = vector.broadcast %cst_90 : f32 to vector<2x128xf32>
    %182 = arith.mulf %181, %159 : vector<2x128xf32>
    %183 = arith.addf %180, %182 : vector<2x128xf32>
    %cst_91 = arith.constant 1.05211103 : f32
    %184 = vector.broadcast %cst_91 : f32 to vector<2x128xf32>
    %185 = arith.mulf %167, %184 : vector<2x128xf32>
    %cst_92 = arith.constant 0.918417036 : f32
    %186 = vector.broadcast %cst_92 : f32 to vector<2x128xf32>
    %187 = arith.mulf %183, %186 : vector<2x128xf32>
    %cst_93 = arith.constant 8.856000e-03 : f32
    %188 = vector.broadcast %cst_93 : f32 to vector<2x128xf32>
    %189 = arith.cmpf ogt, %185, %188 : vector<2x128xf32>
    %cst_94 = arith.constant 0.333333343 : f32
    %190 = vector.broadcast %cst_94 : f32 to vector<2x128xf32>
    %191 = math.powf %185, %190 : vector<2x128xf32>
    %cst_95 = arith.constant 7.787000e+00 : f32
    %192 = vector.broadcast %cst_95 : f32 to vector<2x128xf32>
    %193 = arith.mulf %192, %185 : vector<2x128xf32>
    %cst_96 = arith.constant 0.137931034 : f32
    %194 = vector.broadcast %cst_96 : f32 to vector<2x128xf32>
    %195 = arith.addf %193, %194 : vector<2x128xf32>
    %196 = arith.select %189, %191, %195 : vector<2x128xi1>, vector<2x128xf32>
    %cst_97 = arith.constant 8.856000e-03 : f32
    %197 = vector.broadcast %cst_97 : f32 to vector<2x128xf32>
    %198 = arith.cmpf ogt, %175, %197 : vector<2x128xf32>
    %cst_98 = arith.constant 0.333333343 : f32
    %199 = vector.broadcast %cst_98 : f32 to vector<2x128xf32>
    %200 = math.powf %175, %199 : vector<2x128xf32>
    %cst_99 = arith.constant 7.787000e+00 : f32
    %201 = vector.broadcast %cst_99 : f32 to vector<2x128xf32>
    %202 = arith.mulf %201, %175 : vector<2x128xf32>
    %cst_100 = arith.constant 0.137931034 : f32
    %203 = vector.broadcast %cst_100 : f32 to vector<2x128xf32>
    %204 = arith.addf %202, %203 : vector<2x128xf32>
    %205 = arith.select %198, %200, %204 : vector<2x128xi1>, vector<2x128xf32>
    %cst_101 = arith.constant 8.856000e-03 : f32
    %206 = vector.broadcast %cst_101 : f32 to vector<2x128xf32>
    %207 = arith.cmpf ogt, %187, %206 : vector<2x128xf32>
    %cst_102 = arith.constant 0.333333343 : f32
    %208 = vector.broadcast %cst_102 : f32 to vector<2x128xf32>
    %209 = math.powf %187, %208 : vector<2x128xf32>
    %cst_103 = arith.constant 7.787000e+00 : f32
    %210 = vector.broadcast %cst_103 : f32 to vector<2x128xf32>
    %211 = arith.mulf %210, %187 : vector<2x128xf32>
    %cst_104 = arith.constant 0.137931034 : f32
    %212 = vector.broadcast %cst_104 : f32 to vector<2x128xf32>
    %213 = arith.addf %211, %212 : vector<2x128xf32>
    %214 = arith.select %207, %209, %213 : vector<2x128xi1>, vector<2x128xf32>
    %cst_105 = arith.constant 1.160000e+02 : f32
    %215 = vector.broadcast %cst_105 : f32 to vector<2x128xf32>
    %216 = arith.mulf %215, %205 : vector<2x128xf32>
    %cst_106 = arith.constant 1.600000e+01 : f32
    %217 = vector.broadcast %cst_106 : f32 to vector<2x128xf32>
    %218 = arith.subf %216, %217 : vector<2x128xf32>
    %219 = arith.subf %196, %205 : vector<2x128xf32>
    %cst_107 = arith.constant 5.000000e+02 : f32
    %220 = vector.broadcast %cst_107 : f32 to vector<2x128xf32>
    %221 = arith.mulf %220, %219 : vector<2x128xf32>
    %222 = arith.subf %205, %214 : vector<2x128xf32>
    %cst_108 = arith.constant 2.000000e+02 : f32
    %223 = vector.broadcast %cst_108 : f32 to vector<2x128xf32>
    %224 = arith.mulf %223, %222 : vector<2x128xf32>
    %cst_109 = arith.constant 5.000000e+01 : f32
    %225 = vector.broadcast %cst_109 : f32 to vector<2x128xf32>
    %226 = arith.subf %218, %225 : vector<2x128xf32>
    %cst_110 = arith.constant 0.00999999977 : f32
    %227 = vector.broadcast %cst_110 : f32 to vector<2x128xf32>
    %228 = arith.mulf %226, %227 : vector<2x128xf32>
    %cst_111 = arith.constant 0.0090909088 : f32
    %229 = vector.broadcast %cst_111 : f32 to vector<2x128xf32>
    %230 = arith.mulf %221, %229 : vector<2x128xf32>
    %cst_112 = arith.constant 0.0090909088 : f32
    %231 = vector.broadcast %cst_112 : f32 to vector<2x128xf32>
    %232 = arith.mulf %224, %231 : vector<2x128xf32>
    %233 = arith.subf %113, %228 : vector<2x128xf32>
    %234 = math.absf %233 : vector<2x128xf32>
    %235 = arith.subf %115, %230 : vector<2x128xf32>
    %236 = math.absf %235 : vector<2x128xf32>
    %237 = arith.addf %234, %236 : vector<2x128xf32>
    %238 = arith.subf %117, %232 : vector<2x128xf32>
    %239 = math.absf %238 : vector<2x128xf32>
    %240 = arith.addf %237, %239 : vector<2x128xf32>
    %c0_113 = arith.constant 0 : index
    %c0_114 = arith.constant 0 : index
    %241 = vector.load %arg5[%c0_113, %c0_114] : memref<2x128xf32, #tpu.memory_space<vmem>>, vector<2x128xf32>
    %242 = arith.addf %241, %240 : vector<2x128xf32>
    %c0_115 = arith.constant 0 : index
    %c0_116 = arith.constant 0 : index
    %243 = vector.load %arg5[%c0_115, %c0_116] : memref<2x128xf32, #tpu.memory_space<vmem>>, vector<2x128xf32>
    tpu.vector_store %arg5[%c0_115, %c0_116], %242 {strides = array<i32>} : memref<2x128xf32, #tpu.memory_space<vmem>>, vector<2x128xf32>,
    %c0_i32_117 = arith.constant 0 : i32
    %244 = arith.cmpi eq, %arg1, %c0_i32_117 : i32
    %245 = arith.extui %244 : i1 to i32
    %c0_i32_118 = arith.constant 0 : i32
    %246 = arith.cmpi ne, %245, %c0_i32_118 : i32
    scf.if %246 {
      %c0_119 = arith.constant 0 : index
      %c0_120 = arith.constant 0 : index
      %247 = vector.load %arg5[%c0_119, %c0_120] : memref<2x128xf32, #tpu.memory_space<vmem>>, vector<2x128xf32>
      %cst_121 = arith.constant dense<0.000000e+00> : vector<128xf32>
      %248 = vector.multi_reduction <add>, %247, %cst_121 [0] : vector<2x128xf32> to vector<128xf32>
      %249 = vector.shape_cast %248 : vector<128xf32> to vector<1x128xf32>
      %250 = vector.shape_cast %249 : vector<1x128xf32> to vector<1x1x128xf32>
      %c0_122 = arith.constant 0 : index
      %c0_123 = arith.constant 0 : index
      %c0_124 = arith.constant 0 : index
      %251 = vector.load %arg4[%c0_122, %c0_123, %c0_124] : memref<1x1x128xf32, #tpu.memory_space<vmem>>, vector<1x1x128xf32>
      tpu.vector_store %arg4[%c0_122, %c0_123, %c0_124], %250 {strides = array<i32>} : memref<1x1x128xf32, #tpu.memory_space<vmem>>, vector<1x1x128xf32>,
    } else {
    }
    return
  }
  func.func @transform_0(%arg0: i32, %arg1: i32) -> (i32, i32, i32, i32) {
    %c0_i32 = arith.constant 0 : i32
    %c0_i32_0 = arith.constant 0 : i32
    %c0_i32_1 = arith.constant 0 : i32
    return %arg0, %c0_i32, %arg1, %c0_i32_0 : i32, i32, i32, i32
  }
  func.func @transform_1(%arg0: i32, %arg1: i32) -> (i32, i32, i32, i32) {
    %c0_i32 = arith.constant 0 : i32
    %c0_i32_0 = arith.constant 0 : i32
    %c0_i32_1 = arith.constant 0 : i32
    return %arg0, %c0_i32, %arg1, %c0_i32_0 : i32, i32, i32, i32
  }
  func.func @transform_2(%arg0: i32, %arg1: i32) -> (i32, i32, i32) {
    %c0_i32 = arith.constant 0 : i32
    %c0_i32_0 = arith.constant 0 : i32
    %c0_i32_1 = arith.constant 0 : i32
    return %arg0, %c0_i32, %c0_i32_0 : i32, i32, i32
  }
}

</mosaic_0001>

<llo_original>
// kernel: tpu_custom_call.1
$region0: #{tpu_custom_call.1}
  #allocation0 [shape = 'u32[]', space=smem, size = 0x4, offset = 0x4, fixed_abs, tag = 'smem constant byte address 0x4 - core index']
  #allocation1 [shape = 'u32[72,128]{1,0:T(1,128)}', space=vmem, size = 0x9000, scoped, tag = 'internal scratch']
  #allocation2 [shape = 'f32[2,128]{1,0:T(2,128)}', space=vmem, size = 0x400, scoped, tag = 'scratch operand']
  %s0 = inlined_call_operand.hbm [shape: f32[2,3,2,128], index: 0, kind: input, shape index: {}]
  %s1 = inlined_call_operand.hbm [shape: f32[2,3,2,128], index: 1, kind: input, shape index: {}]
  %s2 = inlined_call_operand.hbm [shape: f32[2,1,128], index: 2, kind: output, shape index: {}]
  %s3 = sld [smem:[#allocation0]]
  $region57: #{tpu_custom_call.1} parent=0
    _
  %s5 = ssub.s32 1, %s3
  %s6 = scalar_select 0, %s5, %s3
  $region1: #{tpu_custom_call.1} parent=0
    #allocation3 [shape = 'u8[6144]{0}', space=vmem, size = 0x1800, scoped, tag = 'input window, operand 0']
    #allocation4 [shape = 's32[2]{0}', space=sflag, size = 0x8, scoped, tag = 'scoped memory for tpu_custom_call.1']
    #allocation5 [shape = 's32[2]{0}', space=sflag, size = 0x8, scoped, tag = 'scoped memory for tpu_custom_call.1']
    #allocation6 [shape = 'u8[6144]{0}', space=vmem, size = 0x1800, scoped, tag = 'input window, operand 1']
    #allocation7 [shape = 's32[2]{0}', space=sflag, size = 0x8, scoped, tag = 'scoped memory for tpu_custom_call.1']
    #allocation8 [shape = 'u8[1024]{0}', space=vmem, size = 0x400, scoped, tag = 'output window, operand 0']
    %7 = vsyncpa [#allocation4], 0
    %s8 = scalar_lea.sflag [#allocation4], 1
    %9 = vsyncpa %s8, 0
    %10 = vsyncpa [#allocation7], 0
    %s11 = scalar_lea.sflag [#allocation7], 1
    %12 = vsyncpa %s11, 0
    %13 = vsyncpa [#allocation5], 0
    %s14 = scalar_lea.sflag [#allocation5], 1
    %15 = vsyncpa %s14, 0
    loop: start=0, step=1, limit=4
    $region2: #{tpu_custom_call.1} parent=1 // loop_pre_header
      _
    $region3: #{tpu_custom_call.1} parent=1 // loop_header
      %s17 = sphi 0, %s21
      %p18 = scmp.ge.s32.totalorder %s17, 4
      %s24 = sphi 0, %s36
      %s25 = sphi 0, %s32
      %s26 = sphi 0, %s24
      %s27 = sphi 0, %s25
      %s28 = sphi 0, %s26
      %s29 = sphi 0, %s27
      %s41 = sphi 0, %s43
      %s44 = sphi 0, %s41
      %s45 = sphi 0, %s44
      %s61 = sphi 0, %s45
      %s69 = sphi 0, %s71
      %s72 = sphi 0, %s69
      %s73 = sphi 0, %s72
      %s89 = sphi 0, %s73
      %s95 = sphi 0, %s97
      %s98 = sphi 0, %s95
      %s99 = sphi 0, %s98
      %s115 = sphi 0, %s99
    $region4: #{tpu_custom_call.1} parent=1 // loop_header_branch
      %20 = sbr.rel (%p18) target = $region8
    $region5: #{tpu_custom_call.1} parent=1 // loop_body
      %s22 = ssub.s32 %s17, 1
      %s23 = ssub.s32 %s17, 2
      %s30 = sadd.s32 1, %s25
      %p31 = scmp.ge.s32.totalorder %s30, 1
      %s32 = scalar_select %p31, 0, %s30
      %s33 = sadd.s32 1, %s24
      %s34 = scalar_select %p31, %s33, %s24
      %p35 = scmp.ge.s32.totalorder %s34, 2
      %s36 = scalar_select %p35, 0, %s34
      %s37 = ssub.s32 %s24, %s36
      %s38 = ssub.s32 %s25, %s32
      %s39 = sor.u32 %s37, %s38
      %p40 = scmp.eq.s32.totalorder %s39, 0
      %s42 = sadd.s32 %s41, 1
      %s43 = scalar_select %p40, %s41, %s42
      %p46 = pneg %p40
      %p47 = scmp.eq.s32.totalorder %s17, 1
      %p48 = por %p46, %p47
      %p49 = scmp.ne.s32.totalorder %s41, %s44
      %p50 = scmp.eq.s32.totalorder %s17, 0
      %p51 = por %p49, %p50
      %p52 = scmp.ne.s32.totalorder %s41, %s44
      %p53 = scmp.eq.s32.totalorder %s22, 1
      %p54 = por %p52, %p53
      %p55 = scmp.ne.s32.totalorder %s44, %s45
      %p56 = scmp.eq.s32.totalorder %s22, 0
      %p57 = por %p55, %p56
      %p58 = scmp.ne.s32.totalorder %s44, %s45
      %p59 = scmp.eq.s32.totalorder %s23, 1
      %p60 = por %p58, %p59
      %p62 = scmp.ne.s32.totalorder %s45, %s61
      %p63 = scmp.eq.s32.totalorder %s23, 0
      %p64 = por %p62, %p63
      %s65 = ssub.s32 %s24, %s36
      %s66 = ssub.s32 %s25, %s32
      %s67 = sor.u32 %s65, %s66
      %p68 = scmp.eq.s32.totalorder %s67, 0
      %s70 = sadd.s32 %s69, 1
      %s71 = scalar_select %p68, %s69, %s70
      %p74 = pneg %p68
      %p75 = scmp.eq.s32.totalorder %s17, 1
      %p76 = por %p74, %p75
      %p77 = scmp.ne.s32.totalorder %s69, %s72
      %p78 = scmp.eq.s32.totalorder %s17, 0
      %p79 = por %p77, %p78
      %p80 = scmp.ne.s32.totalorder %s69, %s72
      %p81 = scmp.eq.s32.totalorder %s22, 1
      %p82 = por %p80, %p81
      %p83 = scmp.ne.s32.totalorder %s72, %s73
      %p84 = scmp.eq.s32.totalorder %s22, 0
      %p85 = por %p83, %p84
      %p86 = scmp.ne.s32.totalorder %s72, %s73
      %p87 = scmp.eq.s32.totalorder %s23, 1
      %p88 = por %p86, %p87
      %p90 = scmp.ne.s32.totalorder %s73, %s89
      %p91 = scmp.eq.s32.totalorder %s23, 0
      %p92 = por %p90, %p91
      %s93 = ssub.s32 %s24, %s36
      %p94 = scmp.eq.s32.totalorder %s93, 0
      %s96 = sadd.s32 %s95, 1
      %s97 = scalar_select %p94, %s95, %s96
      %p100 = pneg %p94
      %p101 = scmp.eq.s32.totalorder %s17, 1
      %p102 = por %p100, %p101
      %p103 = scmp.ne.s32.totalorder %s95, %s98
      %p104 = scmp.eq.s32.totalorder %s17, 0
      %p105 = por %p103, %p104
      %p106 = scmp.ne.s32.totalorder %s95, %s98
      %p107 = scmp.eq.s32.totalorder %s22, 1
      %p108 = por %p106, %p107
      %p109 = scmp.ne.s32.totalorder %s98, %s99
      %p110 = scmp.eq.s32.totalorder %s22, 0
      %p111 = por %p109, %p110
      %p112 = scmp.ne.s32.totalorder %s98, %s99
      %p113 = scmp.eq.s32.totalorder %s23, 1
      %p114 = por %p112, %p113
      %p116 = scmp.ne.s32.totalorder %s99, %s115
      %p117 = scmp.eq.s32.totalorder %s23, 0
      %p118 = por %p116, %p117
      %p119 = scmp.le.s32.totalorder 1, %s17
      %p120 = scmp.lt.s32.totalorder %s17, 3
      %p121 = pnand %p119, %p120
      %p122 = pneg %p121
      // Predicated region
      $region9: #{tpu_custom_call.1} parent=5 // pred_check
        _
      $region10: #{tpu_custom_call.1} parent=5 // pred_check_branch
        %124 = sbr.rel (%p121) target = $region12
      $region11: #{tpu_custom_call.1} parent=5 // pred_region
        %s125 = ssub.s32 %s17, 1
      $region12: #{tpu_custom_call.1} parent=5 // pred_fallthru
        _
      %p126 = scmp.lt.s32.totalorder %s17, 2
      // Predicated region
      $region13: #{tpu_custom_call.1} parent=5 // pred_check
        %p127 = pneg %p126
      $region14: #{tpu_custom_call.1} parent=5 // pred_check_branch
        %129 = sbr.rel (%p127) target = $region16
      $region15: #{tpu_custom_call.1} parent=5 // pred_region
        // Predicated region
        $region17: #{tpu_custom_call.1} parent=15 // pred_check
          %p130 = pneg %p51
        $region18: #{tpu_custom_call.1} parent=15 // pred_check_branch
          %132 = sbr.rel (%p130) target = $region20
        $region19: #{tpu_custom_call.1} parent=15 // pred_region
          %s133 = sand.u32 %s41, 1
          %s134 = scalar_lea.sflag [#allocation4], %s133
          %s135 = sand.u32 %s41, 1
          %s136 = smul.addr %s135, 6
          %s137 = scalar_lea.vmem [#allocation3], %s136
          %139 = vsyncadd %s134, 0
          %s140 = smul.addr %s24, 3
          %s141 = sadd.s32 %s25, %s140
          %s142 = smul.addr %s141, 2
          %s143 = scalar_lea.hbm %s0, %s142
          %s144 = sshll.u32 %s143, 4
          %s145 = int_to_ptr.hbm [resolvable:$true] %s144
          %s146 = sshll.u32 %s137, 4
          %s147 = int_to_ptr.vmem [resolvable:$true] %s146
          %152 = dma.hbm_to_vmem [thread:$0]  %s145, 96, %s147, %s134, 32, 32, 2
        $region20: #{tpu_custom_call.1} parent=15 // pred_fallthru
          _
        // Predicated region
        $region21: #{tpu_custom_call.1} parent=15 // pred_check
          %p153 = pneg %p79
        $region22: #{tpu_custom_call.1} parent=15 // pred_check_branch
          %155 = sbr.rel (%p153) target = $region24
        $region23: #{tpu_custom_call.1} parent=15 // pred_region
          %s156 = sand.u32 %s69, 1
          %s157 = scalar_lea.sflag [#allocation7], %s156
          %s158 = sand.u32 %s69, 1
          %s159 = smul.addr %s158, 6
          %s160 = scalar_lea.vmem [#allocation6], %s159
          %162 = vsyncadd %s157, 0
          %s163 = smul.addr %s24, 3
          %s164 = sadd.s32 %s25, %s163
          %s165 = smul.addr %s164, 2
          %s166 = scalar_lea.hbm %s1, %s165
          %s167 = sshll.u32 %s166, 4
          %s168 = int_to_ptr.hbm [resolvable:$true] %s167
          %s169 = sshll.u32 %s160, 4
          %s170 = int_to_ptr.vmem [resolvable:$true] %s169
          %175 = dma.hbm_to_vmem [thread:$0]  %s168, 96, %s170, %s157, 32, 32, 2
        $region24: #{tpu_custom_call.1} parent=15 // pred_fallthru
          _
      $region16: #{tpu_custom_call.1} parent=5 // pred_fallthru
        _
      %p176 = scmp.le.s32.totalorder 1, %s17
      %p177 = scmp.lt.s32.totalorder %s17, 3
      %p178 = pnand %p176, %p177
      %p179 = pneg %p178
      // Predicated region
      $region25: #{tpu_custom_call.1} parent=5 // pred_check
        _
      $region26: #{tpu_custom_call.1} parent=5 // pred_check_branch
        %181 = sbr.rel (%p178) target = $region28
      $region27: #{tpu_custom_call.1} parent=5 // pred_region
        %s182 = ssub.s32 %s17, 1
        %s183 = sand.u32 %s44, 1
        %s184 = scalar_lea.sflag [#allocation4], %s183
        %s185 = sand.u32 %s44, 1
        %s186 = smul.addr %s185, 6
        %s187 = scalar_lea.vmem [#allocation3], %s186
        // Predicated region
        $region29: #{tpu_custom_call.1} parent=27 // pred_check
          %p188 = pneg %p57
        $region30: #{tpu_custom_call.1} parent=27 // pred_check_branch
          %190 = sbr.rel (%p188) target = $region32
        $region31: #{tpu_custom_call.1} parent=27 // pred_region
          %192 = dma.done %s184, 96
        $region32: #{tpu_custom_call.1} parent=27 // pred_fallthru
          _
        %s193 = sand.u32 %s72, 1
        %s194 = scalar_lea.sflag [#allocation7], %s193
        %s195 = sand.u32 %s72, 1
        %s196 = smul.addr %s195, 6
        %s197 = scalar_lea.vmem [#allocation6], %s196
        // Predicated region
        $region33: #{tpu_custom_call.1} parent=27 // pred_check
          %p198 = pneg %p85
        $region34: #{tpu_custom_call.1} parent=27 // pred_check_branch
          %200 = sbr.rel (%p198) target = $region36
        $region35: #{tpu_custom_call.1} parent=27 // pred_region
          %202 = dma.done %s194, 96
        $region36: #{tpu_custom_call.1} parent=27 // pred_fallthru
          _
        %s203 = sand.u32 %s44, 1
        %s204 = scalar_lea.sflag [#allocation4], %s203
        %s205 = sand.u32 %s44, 1
        %s206 = smul.addr %s205, 6
        %s207 = scalar_lea.vmem [#allocation3], %s206
        %p208 = pneg %p57
        %p209 = pneg %p54
        %s210 = sand.u32 %s72, 1
        %s211 = scalar_lea.sflag [#allocation7], %s210
        %s212 = sand.u32 %s72, 1
        %s213 = smul.addr %s212, 6
        %s214 = scalar_lea.vmem [#allocation6], %s213
        %p215 = pneg %p85
        %p216 = pneg %p82
        %p217 = pneg %p111
        %p218 = pneg %p108
        %s219 = sand.u32 %s98, 1
        %s220 = scalar_lea.sflag [#allocation5], %s219
        %s221 = sand.u32 %s98, 1
        %s222 = scalar_lea.vmem [#allocation8], %s221
        %p223 = scmp.eq.s32.totalorder %s27, 0
        // Predicated region
        $region37: #{tpu_custom_call.1} parent=27 // pred_check
          %p224 = pneg %p223
        $region38: #{tpu_custom_call.1} parent=27 // pred_check_branch
          %226 = sbr.rel (%p224) target = $region40
        $region39: #{tpu_custom_call.1} parent=27 // pred_region
          %227 = vst [vmem:[#allocation2] sm:$0x3] 0.0
        $region40: #{tpu_custom_call.1} parent=27 // pred_fallthru
          _
        %v228 = vld [vmem:[%s187] sm:$0x3]
        %s229 = scalar_lea.vmem %s187, 2 [#allocation3]
        %v230 = vld [vmem:[%s229] sm:$0x3]
        %s231 = scalar_lea.vmem %s187, 4 [#allocation3]
        %v232 = vld [vmem:[%s231] sm:$0x3]
        %v233 = vand.u32 2147483647, %v228
        %vm234 = vcmp.gt.f32.partialorder %v233, 0.04045
        %v235 = vadd.f32 %v233, 0.055
        %v236 = vmul.f32 %v235, 0.9478673
        %v237 = vpow.f32 %v236, 2.4
        %v238 = vmul.f32 %v233, 0.07739938
        %v239 = vsel %vm234, %v237, %v238
        %v240 = vand.u32 2147483647, %v230
        %vm241 = vcmp.gt.f32.partialorder %v240, 0.04045
        %v242 = vadd.f32 %v240, 0.055
        %v243 = vmul.f32 %v242, 0.9478673
        %v244 = vpow.f32 %v243, 2.4
        %v245 = vmul.f32 %v240, 0.07739938
        %v246 = vsel %vm241, %v244, %v245
        %v247 = vand.u32 2147483647, %v232
        %vm248 = vcmp.gt.f32.partialorder %v247, 0.04045
        %v249 = vadd.f32 %v247, 0.055
        %v250 = vmul.f32 %v249, 0.9478673
        %v251 = vpow.f32 %v250, 2.4
        %v252 = vmul.f32 %v247, 0.07739938
        %v253 = vsel %vm248, %v251, %v252
        %v254 = vmul.f32 %v239, 0.412453
        %v255 = vmul.f32 %v246, 0.35758
        %v256 = vadd.f32 %v254, %v255
        %v257 = vmul.f32 %v253, 0.180423
        %v258 = vadd.f32 %v256, %v257
        %v259 = vmul.f32 %v239, 0.212671
        %v260 = vmul.f32 %v246, 0.71516
        %v261 = vadd.f32 %v259, %v260
        %v262 = vmul.f32 %v253, 0.072169
        %v263 = vadd.f32 %v261, %v262
        %v264 = vmul.f32 %v239, 0.019334
        %v265 = vmul.f32 %v246, 0.119193
        %v266 = vadd.f32 %v264, %v265
        %v267 = vmul.f32 %v253, 0.950227
        %v268 = vadd.f32 %v266, %v267
        %v269 = vmul.f32 %v258, 1.052111
        %v270 = vmul.f32 %v268, 0.91841704
        %vm271 = vcmp.gt.f32.partialorder %v269, 0.008856
        %v272 = vpow.f32 %v269, 0.33333334
        %v273 = vmul.f32 %v269, 7.787
        %v274 = vadd.f32 %v273, 0.13793103
        %v275 = vsel %vm271, %v272, %v274
        %vm276 = vcmp.gt.f32.partialorder %v263, 0.008856
        %v277 = vpow.f32 %v263, 0.33333334
        %v278 = vmul.f32 %v263, 7.787
        %v279 = vadd.f32 %v278, 0.13793103
        %v280 = vsel %vm276, %v277, %v279
        %vm281 = vcmp.gt.f32.partialorder %v270, 0.008856
        %v282 = vpow.f32 %v270, 0.33333334
        %v283 = vmul.f32 %v270, 7.787
        %v284 = vadd.f32 %v283, 0.13793103
        %v285 = vsel %vm281, %v282, %v284
        %v286 = vmul.f32 %v280, 116.0
        %v287 = vsub.f32 %v286, 16.0
        %v288 = vsub.f32 %v275, %v280
        %v289 = vmul.f32 %v288, 500.0
        %v290 = vsub.f32 %v280, %v285
        %v291 = vmul.f32 %v290, 200.0
        %v292 = vsub.f32 %v287, 50.0
        %v293 = vmul.f32 %v292, 0.01
        %v294 = vmul.f32 %v289, 0.009090909
        %v295 = vmul.f32 %v291, 0.009090909
        %v296 = vld [vmem:[%s197] sm:$0x3]
        %s297 = scalar_lea.vmem %s197, 2 [#allocation6]
        %v298 = vld [vmem:[%s297] sm:$0x3]
        %s299 = scalar_lea.vmem %s197, 4 [#allocation6]
        %v300 = vld [vmem:[%s299] sm:$0x3]
        %v301 = vand.u32 2147483647, %v296
        %vm302 = vcmp.gt.f32.partialorder %v301, 0.04045
        %v303 = vadd.f32 %v301, 0.055
        %v304 = vmul.f32 %v303, 0.9478673
        %v305 = vpow.f32 %v304, 2.4
        %v306 = vmul.f32 %v301, 0.07739938
        %v307 = vsel %vm302, %v305, %v306
        %v308 = vand.u32 2147483647, %v298
        %vm309 = vcmp.gt.f32.partialorder %v308, 0.04045
        %v310 = vadd.f32 %v308, 0.055
        %v311 = vmul.f32 %v310, 0.9478673
        %v312 = vpow.f32 %v311, 2.4
        %v313 = vmul.f32 %v308, 0.07739938
        %v314 = vsel %vm309, %v312, %v313
        %v315 = vand.u32 2147483647, %v300
        %vm316 = vcmp.gt.f32.partialorder %v315, 0.04045
        %v317 = vadd.f32 %v315, 0.055
        %v318 = vmul.f32 %v317, 0.9478673
        %v319 = vpow.f32 %v318, 2.4
        %v320 = vmul.f32 %v315, 0.07739938
        %v321 = vsel %vm316, %v319, %v320
        %v322 = vmul.f32 %v307, 0.412453
        %v323 = vmul.f32 %v314, 0.35758
        %v324 = vadd.f32 %v322, %v323
        %v325 = vmul.f32 %v321, 0.180423
        %v326 = vadd.f32 %v324, %v325
        %v327 = vmul.f32 %v307, 0.212671
        %v328 = vmul.f32 %v314, 0.71516
        %v329 = vadd.f32 %v327, %v328
        %v330 = vmul.f32 %v321, 0.072169
        %v331 = vadd.f32 %v329, %v330
        %v332 = vmul.f32 %v307, 0.019334
        %v333 = vmul.f32 %v314, 0.119193
        %v334 = vadd.f32 %v332, %v333
        %v335 = vmul.f32 %v321, 0.950227
        %v336 = vadd.f32 %v334, %v335
        %v337 = vmul.f32 %v326, 1.052111
        %v338 = vmul.f32 %v336, 0.91841704
        %vm339 = vcmp.gt.f32.partialorder %v337, 0.008856
        %v340 = vpow.f32 %v337, 0.33333334
        %v341 = vmul.f32 %v337, 7.787
        %v342 = vadd.f32 %v341, 0.13793103
        %v343 = vsel %vm339, %v340, %v342
        %vm344 = vcmp.gt.f32.partialorder %v331, 0.008856
        %v345 = vpow.f32 %v331, 0.33333334
        %v346 = vmul.f32 %v331, 7.787
        %v347 = vadd.f32 %v346, 0.13793103
        %v348 = vsel %vm344, %v345, %v347
        %vm349 = vcmp.gt.f32.partialorder %v338, 0.008856
        %v350 = vpow.f32 %v338, 0.33333334
        %v351 = vmul.f32 %v338, 7.787
        %v352 = vadd.f32 %v351, 0.13793103
        %v353 = vsel %vm349, %v350, %v352
        %v354 = vmul.f32 %v348, 116.0
        %v355 = vsub.f32 %v354, 16.0
        %v356 = vsub.f32 %v343, %v348
        %v357 = vmul.f32 %v356, 500.0
        %v358 = vsub.f32 %v348, %v353
        %v359 = vmul.f32 %v358, 200.0
        %v360 = vsub.f32 %v355, 50.0
        %v361 = vmul.f32 %v360, 0.01
        %v362 = vmul.f32 %v357, 0.009090909
        %v363 = vmul.f32 %v359, 0.009090909
        %v364 = vsub.f32 %v293, %v361
        %v365 = vand.u32 2147483647, %v364
        %v366 = vsub.f32 %v294, %v362
        %v367 = vand.u32 2147483647, %v366
        %v368 = vadd.f32 %v365, %v367
        %v369 = vsub.f32 %v295, %v363
        %v370 = vand.u32 2147483647, %v369
        %v371 = vadd.f32 %v368, %v370
        %v372 = vld [vmem:[#allocation2] sm:$0x3]
        %v373 = vadd.f32 %v372, %v371
        %374 = vst [vmem:[#allocation2] sm:$0x3] %v373
        // Predicated region
        $region41: #{tpu_custom_call.1} parent=27 // pred_check
          %p375 = pneg %p223
        $region42: #{tpu_custom_call.1} parent=27 // pred_check_branch
          %377 = sbr.rel (%p375) target = $region44
        $region43: #{tpu_custom_call.1} parent=27 // pred_region
          %v378 = vld [vmem:[#allocation2] sm:$0x3]
          %vm379 = vcmask 1041408
          %v380 = vsel %vm379, %v378, 0.0
          %v381 = vrot.slane %v380, 4
          %v382 = vadd.f32 %v380, %v381
          %v383 = vrot.slane %v382, 2
          %v384 = vadd.f32 %v382, %v383
          %v385 = vrot.slane %v384, 1
          %v386 = vadd.f32 %v384, %v385
          %387 = vst [vmem:[%s222] sm:$0x1] %v386
        $region44: #{tpu_custom_call.1} parent=27 // pred_fallthru
          _
        %s388 = sand.u32 %s98, 1
        %s389 = scalar_lea.sflag [#allocation5], %s388
        %s390 = sand.u32 %s98, 1
        %s391 = scalar_lea.vmem [#allocation8], %s390
        // Predicated region
        $region45: #{tpu_custom_call.1} parent=27 // pred_check
          %p392 = pneg %p108
        $region46: #{tpu_custom_call.1} parent=27 // pred_check_branch
          %394 = sbr.rel (%p392) target = $region48
        $region47: #{tpu_custom_call.1} parent=27 // pred_region
          %396 = vsyncadd %s389, 0
          %s397 = scalar_lea.hbm %s2, %s26
          %s399 = sshll.u32 %s391, 4
          %s400 = int_to_ptr.vmem [resolvable:$true] %s399
          %s401 = sshll.u32 %s397, 4
          %s402 = int_to_ptr.hbm [resolvable:$true] %s401
          %404 = dma.vmem_to_hbm [thread:$0]  %s400, 16, %s402, %s389
        $region48: #{tpu_custom_call.1} parent=27 // pred_fallthru
          _
      $region28: #{tpu_custom_call.1} parent=5 // pred_fallthru
        _
      %p405 = scmp.le.s32.totalorder 2, %s17
      // Predicated region
      $region49: #{tpu_custom_call.1} parent=5 // pred_check
        %p406 = pneg %p405
      $region50: #{tpu_custom_call.1} parent=5 // pred_check_branch
        %408 = sbr.rel (%p406) target = $region52
      $region51: #{tpu_custom_call.1} parent=5 // pred_region
        %s409 = ssub.s32 %s17, 2
        // Predicated region
        $region53: #{tpu_custom_call.1} parent=51 // pred_check
          %p410 = pneg %p114
        $region54: #{tpu_custom_call.1} parent=51 // pred_check_branch
          %412 = sbr.rel (%p410) target = $region56
        $region55: #{tpu_custom_call.1} parent=51 // pred_region
          %s413 = sand.u32 %s99, 1
          %s414 = scalar_lea.sflag [#allocation5], %s413
          %s415 = sand.u32 %s99, 1
          %s416 = scalar_lea.vmem [#allocation8], %s415
          %418 = dma.done %s414, 16
        $region56: #{tpu_custom_call.1} parent=51 // pred_fallthru
          _
      $region52: #{tpu_custom_call.1} parent=5 // pred_fallthru
        _
    $region6: #{tpu_custom_call.1} parent=1 // loop_footer
      %s21 = sadd.s32 1, %s17
    $region7: #{tpu_custom_call.1} parent=1 // loop_footer_branch
      %16 = sbr.rel target = $region3
    $region8: #{tpu_custom_call.1} parent=1 // loop_exit
      _
    %419 = vsyncpa [#allocation4], 1
    %s420 = scalar_lea.sflag [#allocation4], 1
    %421 = vsyncpa %s420, 1
    %422 = vsyncpa [#allocation7], 1
    %s423 = scalar_lea.sflag [#allocation7], 1
    %424 = vsyncpa %s423, 1
    %425 = vsyncpa [#allocation5], 1
    %s426 = scalar_lea.sflag [#allocation5], 1
    %427 = vsyncpa %s426, 1

</llo_original>
